<compile_context>
chip_gen: v7x
topology: tpu7x:2x2x1
jax: 0.10.0
libtpu: 0.0.40
codegen_flags: <defaults>
</compile_context>

<pallas_src>
import jax
import jax.numpy as jnp
import numpy as np
from jax.experimental import pallas as pl
from jax.experimental.pallas import tpu as pltpu


def _group_fold(u, a):
    """Sum the last axis of (rows, G*a) over the A-periodic groups -> (rows, a).

    out[:, j] = sum_g u[:, g*a + j].  Pure static slices + VPU adds (no MXU),
    exact f32 accumulation; handles any group count G (odd counts peel a carry).
    Total add work is O(rows * K) — hidden under the HBM-bound stream.
    """
    g = u.shape[-1] // a
    carry = None
    while g > 1:
        if g % 2 == 1:
            tail = u[:, (g - 1) * a : g * a]
            carry = tail if carry is None else carry + tail
            g -= 1
        half = g // 2
        u = u[:, : half * a] + u[:, half * a : g * a]
        g = half
    if carry is not None:
        u = u + carry
    return u


def dummynet_kernel(x_ref, w_ref, o_ref):
    """abs -> per-lane weight -> A-periodic fold -> +eps -> per-sample normalize.

    x_ref : (TN, TK) f32, lane-dense slab of the flattened (N, K=C*L*A) input
    w_ref : (1, TK)  f32, w[k] = |const_c(k)| / (C*L)   (resident weight vector)
    o_ref : (TN, A)  f32, doubles as the f32 accumulator across the K grid axis
    """
    a = o_ref.shape[-1]
    kstep = pl.program_id(1)

    @pl.when(kstep == 0)
    def _init():
        o_ref[...] = jnp.zeros_like(o_ref)

    # Weighted abs stream (pure VPU, lane-dense) + exact-f32 group reduction.
    u = jnp.abs(x_ref[...]) * w_ref[...]
    o_ref[...] += _group_fold(u, a)

    @pl.when(kstep == pl.num_programs(1) - 1)
    def _finalize():
        means = o_ref[...] + 1e-6
        denom = jnp.sum(means, axis=1, keepdims=True)   # (TN, 1), tiny
        o_ref[...] = means / denom


def _round_up(v, m):
    return ((v + m - 1) // m) * m


def _choose_tiles(n, k, a, itemsize=4, target_block_bytes=8 * 1024 * 1024):
    """Pick (tn, tk).

    Single-K-tile path: ~8 MiB sample blocks (review item 3); for small N the
    tile equals N (full-dim block, no padded-row waste); for large N the tile is
    capped so the parallel axis has >=2 (>=4) grid steps for v7x megacore.
    K-tiled path: triggers only when even 8 rows exceed the block budget; K tiles
    are whole multiples of A so asset groups never split across tiles.
    """
    row_bytes = k * itemsize
    if 8 * row_bytes <= target_block_bytes:
        tk = k
        tn = max(1, target_block_bytes // row_bytes)
        tn = min(tn, n)
        tn = n if n <= 8 else _round_up(tn, 8)
        if n >= 32:
            tn = min(tn, _round_up(pl.cdiv(n, 4), 8))
        elif n > 8:
            tn = min(tn, _round_up(pl.cdiv(n, 2), 8))
    else:
        tn = min(n, 8)
        groups_per_tile = max(1, target_block_bytes // (8 * itemsize * a))
        tk = min(k, groups_per_tile * a)
    return tn, tk


@jax.jit
def dummynet_forward(x, constant):
    """DummyNet forward via a gridded, double-buffered Pallas call.

    x        : (n_samples, n_channels, lookback, n_assets) float32
    constant : (n_channels,) float32 learnable per-channel constant
    returns  : (n_samples, n_assets) float32 weights (rows sum to 1)
    """
    n, ch, lb, na = x.shape
    k = ch * lb * na

    # Free, contiguous reshape: trailing dims merge -> lane-dense (N, K) slab.
    x2d = x.reshape(n, k).astype(jnp.float32)

    # Fold |constant| and the 1/(C*L) mean factor into a (1, K) per-lane weight
    # vector (K*4 bytes resident in VMEM; replaces the old (K, A) matrix).
    w_per_ch = jnp.abs(constant).astype(jnp.float32) / float(ch * lb)     # (C,)
    w_vec = jnp.broadcast_to(w_per_ch[:, None], (ch, lb * na)).reshape(1, k)

    tn, tk = _choose_tiles(n, k, na, itemsize=x2d.dtype.itemsize)
    kt = pl.cdiv(k, tk)
    k_pad = kt * tk
    if k_pad != k:
        # Only in the K-tiled regime: zero columns are inert in the weighted sum
        # (pad is whole A-groups since A | k and A | tk). Single-tile shapes with
        # K not a multiple of 128 are streamed ragged rather than paying an extra
        # full HBM pass for cosmetic padding.
        x2d = jnp.pad(x2d, ((0, 0), (0, k_pad - k)))
        w_vec = jnp.pad(w_vec, ((0, 0), (0, k_pad - k)))

    grid = (pl.cdiv(n, tn), kt)

    return pl.pallas_call(
        dummynet_kernel,
        out_shape=jax.ShapeDtypeStruct((n, na), jnp.float32),
        grid=grid,
        in_specs=[
            pl.BlockSpec((tn, tk), lambda i, j: (i, j)),   # streamed, double-buffered
            pl.BlockSpec((1, tk), lambda i, j: (0, j)),    # tiny resident weights
        ],
        out_specs=pl.BlockSpec((tn, na), lambda i, j: (i, 0)),
        compiler_params=pltpu.CompilerParams(
            # Sample axis shards across the two v7x TensorCores; the K axis (if
            # tiled) is a sequential reduction with the output as accumulator.
            dimension_semantics=("parallel", "arbitrary"),
            vmem_limit_bytes=48 * 1024 * 1024,
        ),
        cost_estimate=pl.CostEstimate(
            flops=3 * n * k,                       # abs + weight mul + adds
            transcendentals=0,
            bytes_accessed=(n * k + k + n * na) * 4,
        ),
    )(x2d, w_vec)


def dummynet_reference(x, constant):
    """Pure-JAX reference mirroring the PyTorch module exactly."""
    c = constant.reshape(1, -1, 1, 1).astype(x.dtype)
    temp = x * c
    means = jnp.abs(temp).mean(axis=(1, 2)) + 1e-6
    return means / means.sum(axis=1, keepdims=True)


if __name__ == "__main__":
    # Small shapes consistent with the module's forward contract:
    # (n_samples=2, n_channels=4, lookback=16, n_assets=16)
    n_samples, n_channels, lookback, n_assets = 2, 4, 16, 16

    key = jax.random.PRNGKey(0)
    kx, kc = jax.random.split(key)
    x = jax.random.normal(
        kx, (n_samples, n_channels, lookback, n_assets), dtype=jnp.float32
    )
    # MultiplyByConstant inits to ones; use a non-trivial (possibly negative)
    # constant so the per-channel weighting path is actually exercised.
    constant = jax.random.normal(kc, (n_channels,), dtype=jnp.float32)

    out = jax.block_until_ready(dummynet_forward(x, constant))
    ref = dummynet_reference(x, constant)

    np.testing.assert_allclose(np.asarray(out), np.asarray(ref), rtol=1e-5, atol=1e-6)
    assert out.shape == (n_samples, n_assets)
    # Portfolio weights sum to 1 per sample.
    np.testing.assert_allclose(
        np.asarray(out.sum(axis=1)), np.ones(n_samples), rtol=1e-5, atol=1e-6
    )

    print("KERNEL_OK")
</pallas_src>

<mosaic_0001>
module attributes {stable_mosaic.version = 11 : i64} {
  func.func @dummynet_kernel(%arg0: i32, %arg1: i32, %arg2: memref<2x1024xf32, #tpu.memory_space<vmem>>, %arg3: memref<1x1024xf32, #tpu.memory_space<vmem>>, %arg4: memref<2x16xf32, #tpu.memory_space<vmem>>) attributes {dimension_semantics = [#tpu.dimension_semantics<parallel>, #tpu.dimension_semantics<arbitrary>], iteration_bounds = array<i64: 1, 1>, scalar_prefetch = 0 : i64, scratch_operands = 0 : i64, tpu.core_type = #tpu.core_type<tc>, window_params = [{transform_indices = @transform_0, window_bounds = array<i64: 2, 1024>}, {transform_indices = @transform_1, window_bounds = array<i64: 1, 1024>}, {transform_indices = @transform_2, window_bounds = array<i64: 2, 16>}]} {
    %c0_i32 = arith.constant 0 : i32
    %0 = arith.cmpi eq, %arg1, %c0_i32 : i32
    %1 = arith.extui %0 : i1 to i32
    %c0_i32_0 = arith.constant 0 : i32
    %2 = arith.cmpi ne, %1, %c0_i32_0 : i32
    scf.if %2 {
      %cst = arith.constant 0.000000e+00 : f32
      %32 = vector.broadcast %cst : f32 to vector<2x16xf32>
      %c0_10 = arith.constant 0 : index
      %c0_11 = arith.constant 0 : index
      %33 = vector.load %arg4[%c0_10, %c0_11] : memref<2x16xf32, #tpu.memory_space<vmem>>, vector<2x16xf32>
      tpu.vector_store %arg4[%c0_10, %c0_11], %32 {strides = array<i32>} : memref<2x16xf32, #tpu.memory_space<vmem>>, vector<2x16xf32>,
    } else {
    }
    %c0 = arith.constant 0 : index
    %c0_1 = arith.constant 0 : index
    %3 = vector.load %arg2[%c0, %c0_1] : memref<2x1024xf32, #tpu.memory_space<vmem>>, vector<2x1024xf32>
    %4 = math.absf %3 : vector<2x1024xf32>
    %c0_2 = arith.constant 0 : index
    %c0_3 = arith.constant 0 : index
    %5 = vector.load %arg3[%c0_2, %c0_3] : memref<1x1024xf32, #tpu.memory_space<vmem>>, vector<1x1024xf32>
    %6 = vector.broadcast %5 : vector<1x1024xf32> to vector<2x1024xf32>
    %7 = arith.mulf %4, %6 : vector<2x1024xf32>
    %c0_4 = arith.constant 0 : index
    %c0_5 = arith.constant 0 : index
    %8 = vector.load %arg4[%c0_4, %c0_5] : memref<2x16xf32, #tpu.memory_space<vmem>>, vector<2x16xf32>
    %9 = vector.extract_strided_slice %7 {offsets = [0, 0], sizes = [2, 512], strides = [1, 1]} : vector<2x1024xf32> to vector<2x512xf32>
    %10 = vector.extract_strided_slice %7 {offsets = [0, 512], sizes = [2, 512], strides = [1, 1]} : vector<2x1024xf32> to vector<2x512xf32>
    %11 = arith.addf %9, %10 : vector<2x512xf32>
    %12 = vector.extract_strided_slice %11 {offsets = [0, 0], sizes = [2, 256], strides = [1, 1]} : vector<2x512xf32> to vector<2x256xf32>
    %13 = vector.extract_strided_slice %11 {offsets = [0, 256], sizes = [2, 256], strides = [1, 1]} : vector<2x512xf32> to vector<2x256xf32>
    %14 = arith.addf %12, %13 : vector<2x256xf32>
    %15 = vector.extract_strided_slice %14 {offsets = [0, 0], sizes = [2, 128], strides = [1, 1]} : vector<2x256xf32> to vector<2x128xf32>
    %16 = vector.extract_strided_slice %14 {offsets = [0, 128], sizes = [2, 128], strides = [1, 1]} : vector<2x256xf32> to vector<2x128xf32>
    %17 = arith.addf %15, %16 : vector<2x128xf32>
    %18 = vector.extract_strided_slice %17 {offsets = [0, 0], sizes = [2, 64], strides = [1, 1]} : vector<2x128xf32> to vector<2x64xf32>
    %19 = vector.extract_strided_slice %17 {offsets = [0, 64], sizes = [2, 64], strides = [1, 1]} : vector<2x128xf32> to vector<2x64xf32>
    %20 = arith.addf %18, %19 : vector<2x64xf32>
    %21 = vector.extract_strided_slice %20 {offsets = [0, 0], sizes = [2, 32], strides = [1, 1]} : vector<2x64xf32> to vector<2x32xf32>
    %22 = vector.extract_strided_slice %20 {offsets = [0, 32], sizes = [2, 32], strides = [1, 1]} : vector<2x64xf32> to vector<2x32xf32>
    %23 = arith.addf %21, %22 : vector<2x32xf32>
    %24 = vector.extract_strided_slice %23 {offsets = [0, 0], sizes = [2, 16], strides = [1, 1]} : vector<2x32xf32> to vector<2x16xf32>
    %25 = vector.extract_strided_slice %23 {offsets = [0, 16], sizes = [2, 16], strides = [1, 1]} : vector<2x32xf32> to vector<2x16xf32>
    %26 = arith.addf %24, %25 : vector<2x16xf32>
    %27 = arith.addf %8, %26 : vector<2x16xf32>
    %c0_6 = arith.constant 0 : index
    %c0_7 = arith.constant 0 : index
    %28 = vector.load %arg4[%c0_6, %c0_7] : memref<2x16xf32, #tpu.memory_space<vmem>>, vector<2x16xf32>
    tpu.vector_store %arg4[%c0_6, %c0_7], %27 {strides = array<i32>} : memref<2x16xf32, #tpu.memory_space<vmem>>, vector<2x16xf32>,
    %c0_i32_8 = arith.constant 0 : i32
    %29 = arith.cmpi eq, %arg1, %c0_i32_8 : i32
    %30 = arith.extui %29 : i1 to i32
    %c0_i32_9 = arith.constant 0 : i32
    %31 = arith.cmpi ne, %30, %c0_i32_9 : i32
    scf.if %31 {
      %c0_10 = arith.constant 0 : index
      %c0_11 = arith.constant 0 : index
      %32 = vector.load %arg4[%c0_10, %c0_11] : memref<2x16xf32, #tpu.memory_space<vmem>>, vector<2x16xf32>
      %cst = arith.constant 9.99999997E-7 : f32
      %33 = vector.broadcast %cst : f32 to vector<2x16xf32>
      %34 = arith.addf %32, %33 : vector<2x16xf32>
      %cst_12 = arith.constant dense<0.000000e+00> : vector<2xf32>
      %35 = vector.multi_reduction <add>, %34, %cst_12 [1] : vector<2x16xf32> to vector<2xf32>
      %36 = vector.shape_cast %35 : vector<2xf32> to vector<2x1xf32>
      %37 = vector.broadcast %36 : vector<2x1xf32> to vector<2x16xf32>
      %38 = arith.divf %34, %37 : vector<2x16xf32>
      %c0_13 = arith.constant 0 : index
      %c0_14 = arith.constant 0 : index
      %39 = vector.load %arg4[%c0_13, %c0_14] : memref<2x16xf32, #tpu.memory_space<vmem>>, vector<2x16xf32>
      tpu.vector_store %arg4[%c0_13, %c0_14], %38 {strides = array<i32>} : memref<2x16xf32, #tpu.memory_space<vmem>>, vector<2x16xf32>,
    } else {
    }
    return
  }
  func.func @transform_0(%arg0: i32, %arg1: i32) -> (i32, i32) {
    %c0_i32 = arith.constant 0 : i32
    return %arg0, %arg1 : i32, i32
  }
  func.func @transform_1(%arg0: i32, %arg1: i32) -> (i32, i32) {
    %c0_i32 = arith.constant 0 : i32
    %c0_i32_0 = arith.constant 0 : i32
    return %c0_i32, %arg1 : i32, i32
  }
  func.func @transform_2(%arg0: i32, %arg1: i32) -> (i32, i32) {
    %c0_i32 = arith.constant 0 : i32
    %c0_i32_0 = arith.constant 0 : i32
    return %arg0, %c0_i32 : i32, i32
  }
}

</mosaic_0001>

<llo_original>
// kernel: dummynet_forward.1
$region0: #{dummynet_forward.1}
  #allocation0 [shape = 'u32[]', space=smem, size = 0x4, offset = 0x4, fixed_abs, tag = 'smem constant byte address 0x4 - core index']
  #allocation1 [shape = 'u32[144,128]{1,0:T(1,128)}', space=vmem, size = 0x12000, scoped, tag = 'internal scratch']
  %s0 = inlined_call_operand.vmem [shape: f32[2,1024], index: 0, kind: input, shape index: {}]
  %s1 = inlined_call_operand.vmem [shape: f32[1,1024], index: 1, kind: input, shape index: {}]
  %s2 = inlined_call_operand.hbm [shape: f32[2,16], index: 2, kind: output, shape index: {}]
  %s3 = sld [smem:[#allocation0]]
  $region26: #{dummynet_forward.1} parent=0
    _
  %s5 = ssub.s32 1, %s3
  %s6 = scalar_select 0, %s5, %s3
  $region1: #{dummynet_forward.1} parent=0
    #allocation2 [shape = 'u8[1024]{0}', space=vmem, size = 0x400, scoped, tag = 'output window, operand 0, single buffered']
    #allocation3 [shape = 's32[1]{0}', space=sflag, size = 0x4, scoped, tag = 'scoped memory for dummynet_forward.1']
    %7 = vsyncpa [#allocation3], 0
    // Predicated region
    $region2: #{dummynet_forward.1} parent=1 // pred_check
      _
    $region3: #{dummynet_forward.1} parent=1 // pred_check_branch
      %9 = sbr.rel (0) target = $region5
    $region4: #{dummynet_forward.1} parent=1 // pred_region
      _
    $region5: #{dummynet_forward.1} parent=1 // pred_fallthru
      _
    // Predicated region
    $region6: #{dummynet_forward.1} parent=1 // pred_check
      _
    $region7: #{dummynet_forward.1} parent=1 // pred_check_branch
      %11 = sbr.rel (0) target = $region9
    $region8: #{dummynet_forward.1} parent=1 // pred_region
      _
    $region9: #{dummynet_forward.1} parent=1 // pred_fallthru
      _
    %p12 = scmp.eq.s32.totalorder 0, 0
    // Predicated region
    $region10: #{dummynet_forward.1} parent=1 // pred_check
      %p13 = pneg %p12
    $region11: #{dummynet_forward.1} parent=1 // pred_check_branch
      %15 = sbr.rel (%p13) target = $region13
    $region12: #{dummynet_forward.1} parent=1 // pred_region
      %vm16 = vcmask 123904
      %17 = vst.msk [vmem:[#allocation2] sm:$0x3] %vm16, 0.0
    $region13: #{dummynet_forward.1} parent=1 // pred_fallthru
      _
    %v18 = vld [vmem:[%s0] sm:$0xff]
    %v19 = vld [vmem:[%s0 + $0x8] sm:$0xff]
    %v20 = vand.u32 2147483647, %v18
    %v21 = vand.u32 2147483647, %v19
    %v22 = vld [vmem:[%s1] sm:$0xff]
    %v24 = vlaneseq
    %v25 = vshrl.u32 %v24, 7
    %v26 = vsub.s32 0, %v25
    %v27 = vrot.slane %v22, %v26
    %v28 = vlaneseq
    %v29 = vshrl.u32 %v28, 7
    %v30 = vsub.s32 1, %v29
    %v31 = vrot.slane %v22, %v30
    %v32 = vlaneseq
    %v33 = vshrl.u32 %v32, 7
    %v34 = vsub.s32 2, %v33
    %v35 = vrot.slane %v22, %v34
    %v36 = vlaneseq
    %v37 = vshrl.u32 %v36, 7
    %v38 = vsub.s32 3, %v37
    %v39 = vrot.slane %v22, %v38
    %v40 = vlaneseq
    %v41 = vshrl.u32 %v40, 7
    %v42 = vsub.s32 4, %v41
    %v43 = vrot.slane %v22, %v42
    %v44 = vlaneseq
    %v45 = vshrl.u32 %v44, 7
    %v46 = vsub.s32 5, %v45
    %v47 = vrot.slane %v22, %v46
    %v48 = vlaneseq
    %v49 = vshrl.u32 %v48, 7
    %v50 = vsub.s32 6, %v49
    %v51 = vrot.slane %v22, %v50
    %v52 = vlaneseq
    %v53 = vshrl.u32 %v52, 7
    %v54 = vsub.s32 7, %v53
    %v55 = vrot.slane %v22, %v54
    %v56 = vcombine.low %v27, %v31
    %v57 = vcombine.low %v35, %v39
    %v59 = vunpack.c.l.s4 1983009808
    %v60 = vunpack.c.0.s8 %v59
    %v61 = vlaneseq
    %v62 = vshrl.u32 %v61, 7
    %v63 = vsub.s32 %v60, %v62
    %v64 = vrot.slane %v56, %v63
    %v66 = vunpack.c.l.s4 1983009808
    %v67 = vunpack.c.0.s8 %v66
    %v68 = vlaneseq
    %v69 = vshrl.u32 %v68, 7
    %v70 = vsub.s32 %v67, %v69
    %v71 = vrot.slane %v57, %v70
    %v72 = vcombine.low %v64, %v71
    %v73 = vcombine.low %v43, %v47
    %v74 = vcombine.low %v51, %v55
    %v76 = vunpack.c.l.s4 1983009808
    %v77 = vunpack.c.0.s8 %v76
    %v78 = vlaneseq
    %v79 = vshrl.u32 %v78, 7
    %v80 = vsub.s32 %v77, %v79
    %v81 = vrot.slane %v73, %v80
    %v83 = vunpack.c.l.s4 1983009808
    %v84 = vunpack.c.0.s8 %v83
    %v85 = vlaneseq
    %v86 = vshrl.u32 %v85, 7
    %v87 = vsub.s32 %v84, %v86
    %v88 = vrot.slane %v74, %v87
    %v89 = vcombine.low %v81, %v88
    %v92 = vmul.f32 %v20, %v72
    %v93 = vmul.f32 %v21, %v89
    %v94 = vld [vmem:[#allocation2] sm:$0x3]
    %v95 = vadd.f32 %v92, %v93
    %v97 = vrot.slane %v95, 4
    %v99 = vadd.f32 %v95, %v97
    %v101 = vrot.slane %v99, 2
    %v103 = vadd.f32 %v99, %v101
    %105 = vrot.lane.b32.xlu0 %v103, 64
    %v106 = vpop.permute.xlu0 %105
    %v108 = vadd.f32 %v103, %v106
    %110 = vrot.lane.b32.xlu0 %v108, 96
    %v111 = vpop.permute.xlu0 %110
    %v113 = vadd.f32 %v108, %v111
    %115 = vrot.lane.b32.xlu0 %v113, 112
    %v116 = vpop.permute.xlu0 %115
    %v118 = vadd.f32 %v113, %v116
    %v119 = vadd.f32 %v94, %v118
    %vm120 = vcmask 123904
    %121 = vst.msk [vmem:[#allocation2] sm:$0x3] %vm120, %v119
    // Predicated region
    $region14: #{dummynet_forward.1} parent=1 // pred_check
      %p122 = pneg %p12
    $region15: #{dummynet_forward.1} parent=1 // pred_check_branch
      %124 = sbr.rel (%p122) target = $region17
    $region16: #{dummynet_forward.1} parent=1 // pred_region
      %v125 = vld [vmem:[#allocation2] sm:$0x3]
      %v126 = vadd.f32 %v125, 1e-06
      %v127 = vsel %vm120, %v126, 0.0
      %128 = vadd.xlane.f32.xlu0 %v127
      %v129 = vpop.xlane.xlu0 %128
      %v130 = vrcp.pop %v129
      %v131 = vmul.f32 %v126, %v130
      %132 = vst.msk [vmem:[#allocation2] sm:$0x3] %vm120, %v131
    $region17: #{dummynet_forward.1} parent=1 // pred_fallthru
      _
    // Predicated region
    $region18: #{dummynet_forward.1} parent=1 // pred_check
      _
    $region19: #{dummynet_forward.1} parent=1 // pred_check_branch
      %134 = sbr.rel (0) target = $region21
    $region20: #{dummynet_forward.1} parent=1 // pred_region
      %s136 = ssub.s32 32, 32
      %137 = vsyncadd [#allocation3], %s136
      %s139 = sshll.u32 [#allocation2], 4
      %s140 = int_to_ptr.vmem [resolvable:$true] %s139
      %142 = dma.vmem_to_hbm [thread:$0]  %s140, 32, %s2, [#allocation3]
    $region21: #{dummynet_forward.1} parent=1 // pred_fallthru
      _
    // Predicated region
    $region22: #{dummynet_forward.1} parent=1 // pred_check
      _
    $region23: #{dummynet_forward.1} parent=1 // pred_check_branch
      %144 = sbr.rel (0) target = $region25
    $region24: #{dummynet_forward.1} parent=1 // pred_region
      %145 = dma.done [#allocation3], 32
    $region25: #{dummynet_forward.1} parent=1 // pred_fallthru
      _
    %146 = vsyncpa [#allocation3], 1

</llo_original>
